<compile_context>
chip_gen: v7x
topology: tpu7x:2x2x1
jax: 0.10.0
libtpu: 0.0.40
codegen_flags: <defaults>
</compile_context>

<pallas_src>
import jax
import jax.numpy as jnp
from jax.experimental import pallas as pl
from jax.experimental.pallas import tpu as pltpu

hidden_size = 8
_LANES = 128


def generator_kernel(x_ref, w1_ref, b1_ref, w2_ref, b2_ref, o_ref):
    # x_ref/o_ref: (tm, 128) f32 in VMEM; w1/b1/w2: (H,) f32 in SMEM; b2: (1,)
    x = x_ref[...]                                    # (tm, 128)

    # Hoist the SMEM scalar reads above the unrolled loop.
    w1 = [w1_ref[k] for k in range(hidden_size)]
    b1 = [b1_ref[k] for k in range(hidden_size)]
    w2 = [w2_ref[k] for k in range(hidden_size)]

    # Fold b2 into the accumulator init (drops the epilogue add).
    acc = jnp.full_like(x, b2_ref[0])
    for k in range(hidden_size):                      # unrolled, H = 8
        # VPU FMA + native EUP tanh + VPU FMA per hidden unit.
        acc = acc + w2[k] * jnp.tanh(x * w1[k] + b1[k])
    o_ref[...] = acc


def generator_forward(x, w1, b1, w2, b2, *, block_rows=1024):
    """x: (B, 1) f32.  w1: (1, H), b1: (1, H), w2: (H, 1), b2: (1, 1)."""
    B = x.shape[0]
    H = w1.shape[-1]

    # Parameters flattened wrapper-side (w2 "transpose" is free here).
    w1_s = w1.reshape(-1).astype(jnp.float32)         # (H,)
    b1_s = b1.reshape(-1).astype(jnp.float32)         # (H,)
    w2_s = w2.reshape(-1).astype(jnp.float32)         # (H,)
    b2_s = b2.reshape(-1).astype(jnp.float32)         # (1,)

    rows = pl.cdiv(B, _LANES)

    # ---- small-batch bypass: single-tile workloads are launch-dominated ----
    if rows <= 8:
        xf = x.astype(jnp.float32)
        return jnp.tanh(xf @ w1_s[None, :] + b1_s[None, :]) @ w2_s[:, None] + b2_s[0]

    # ---- lane-dense repack of x: (B, 1) -> (rows, 128) ---------------------
    xf = x.reshape(-1).astype(jnp.float32)
    lane_aligned = (B % _LANES == 0)
    if lane_aligned:
        x2d = xf.reshape(rows, _LANES)                # free bitcast, no copy
    else:
        x2d = jnp.pad(xf, (0, rows * _LANES - B)).reshape(rows, _LANES)

    # tm: multiple of 8, chosen so the grid has >= 2 blocks (v7x megacore),
    # capped at block_rows for the v5e roofline sweet spot.
    tm = min(block_rows, max(8, pl.cdiv(pl.cdiv(rows, 2), 8) * 8))
    grid = (pl.cdiv(rows, tm),)                       # partial last block OK

    total = rows * _LANES
    out2d = pl.pallas_call(
        generator_kernel,
        out_shape=jax.ShapeDtypeStruct((rows, _LANES), jnp.float32),
        grid=grid,
        in_specs=[
            pl.BlockSpec((tm, _LANES), lambda i: (i, 0)),
            pl.BlockSpec(memory_space=pltpu.MemorySpace.SMEM),
            pl.BlockSpec(memory_space=pltpu.MemorySpace.SMEM),
            pl.BlockSpec(memory_space=pltpu.MemorySpace.SMEM),
            pl.BlockSpec(memory_space=pltpu.MemorySpace.SMEM),
        ],
        out_specs=pl.BlockSpec((tm, _LANES), lambda i: (i, 0)),
        compiler_params=pltpu.CompilerParams(
            dimension_semantics=("parallel",)),
        cost_estimate=pl.CostEstimate(
            flops=4 * total * H,            # mul+add (layer1) + mul+add (layer2)
            transcendentals=total * H,      # one tanh per hidden unit per element
            bytes_accessed=8 * total + 16 * H,
        ),
    )(x2d, w1_s, b1_s, w2_s, b2_s)

    if lane_aligned:
        return out2d.reshape(B, 1)                    # free bitcast, no slice
    return out2d.reshape(-1)[:B].reshape(B, 1)


def init_params(key, hidden):
    # Deterministic init mimicking nn.Linear default: U(-1/sqrt(fan_in), +)
    k1, k2, k3, k4 = jax.random.split(key, 4)
    bound1 = 1.0 / jnp.sqrt(1.0)      # fan_in = 1
    bound2 = 1.0 / jnp.sqrt(hidden)   # fan_in = hidden
    w1 = jax.random.uniform(k1, (1, hidden), jnp.float32, -bound1, bound1)
    b1 = jax.random.uniform(k2, (1, hidden), jnp.float32, -bound1, bound1)
    w2 = jax.random.uniform(k3, (hidden, 1), jnp.float32, -bound2, bound2)
    b2 = jax.random.uniform(k4, (1, 1), jnp.float32, -bound2, bound2)
    return w1, b1, w2, b2


if __name__ == "__main__":
    key = jax.random.PRNGKey(0)
    kx0, kx1, kx2, kp = jax.random.split(key, 4)

    w1, b1, w2, b2 = init_params(kp, hidden_size)

    def reference(xv):
        return jnp.tanh(xv @ w1 + b1) @ w2 + b2

    # 1) Tiny batch consistent with the module -> small-batch XLA bypass.
    B0 = 8
    x0 = jax.random.normal(kx0, (B0, 1), jnp.float32)
    o0 = jax.block_until_ready(generator_forward(x0, w1, b1, w2, b2))
    assert o0.shape == (B0, 1)
    assert jnp.allclose(o0, reference(x0), atol=1e-5, rtol=1e-5)

    # 2) Pallas path, B % 128 == 0 fast path (no pad/slice), 2 grid blocks.
    B1 = 2048
    x1 = jax.random.normal(kx1, (B1, 1), jnp.float32)
    o1 = jax.block_until_ready(generator_forward(x1, w1, b1, w2, b2))
    assert o1.shape == (B1, 1)
    assert jnp.allclose(o1, reference(x1), atol=1e-5, rtol=1e-5)

    # 3) Pallas path with lane padding + partial last grid block.
    B2 = 1300   # rows = 11, tm = 8, grid = 2 (second block partially valid)
    x2 = jax.random.normal(kx2, (B2, 1), jnp.float32)
    o2 = jax.block_until_ready(generator_forward(x2, w1, b1, w2, b2))
    assert o2.shape == (B2, 1)
    assert jnp.allclose(o2, reference(x2), atol=1e-5, rtol=1e-5)

    print("KERNEL_OK")
</pallas_src>

<mosaic_0001>
module attributes {stable_mosaic.version = 11 : i64} {
  func.func @generator_kernel(%arg0: i32, %arg1: memref<8x128xf32, #tpu.memory_space<vmem>>, %arg2: memref<8xf32, #tpu.memory_space<smem>>, %arg3: memref<8xf32, #tpu.memory_space<smem>>, %arg4: memref<8xf32, #tpu.memory_space<smem>>, %arg5: memref<1xf32, #tpu.memory_space<smem>>, %arg6: memref<8x128xf32, #tpu.memory_space<vmem>>) attributes {dimension_semantics = [#tpu.dimension_semantics<parallel>], iteration_bounds = array<i64: 2>, scalar_prefetch = 0 : i64, scratch_operands = 0 : i64, tpu.core_type = #tpu.core_type<tc>, window_params = [{transform_indices = @transform_0, window_bounds = array<i64: 8, 128>}, {transform_indices = @transform_1, window_bounds = array<i64: 8>}, {transform_indices = @transform_2, window_bounds = array<i64: 8>}, {transform_indices = @transform_3, window_bounds = array<i64: 8>}, {transform_indices = @transform_4, window_bounds = array<i64: 1>}, {transform_indices = @transform_5, window_bounds = array<i64: 8, 128>}]} {
    %c0 = arith.constant 0 : index
    %c0_0 = arith.constant 0 : index
    %0 = vector.load %arg1[%c0, %c0_0] : memref<8x128xf32, #tpu.memory_space<vmem>>, vector<8x128xf32>
    %c0_1 = arith.constant 0 : index
    %1 = memref.load %arg2[%c0_1] : memref<8xf32, #tpu.memory_space<smem>>
    %c1 = arith.constant 1 : index
    %2 = memref.load %arg2[%c1] : memref<8xf32, #tpu.memory_space<smem>>
    %c2 = arith.constant 2 : index
    %3 = memref.load %arg2[%c2] : memref<8xf32, #tpu.memory_space<smem>>
    %c3 = arith.constant 3 : index
    %4 = memref.load %arg2[%c3] : memref<8xf32, #tpu.memory_space<smem>>
    %c4 = arith.constant 4 : index
    %5 = memref.load %arg2[%c4] : memref<8xf32, #tpu.memory_space<smem>>
    %c5 = arith.constant 5 : index
    %6 = memref.load %arg2[%c5] : memref<8xf32, #tpu.memory_space<smem>>
    %c6 = arith.constant 6 : index
    %7 = memref.load %arg2[%c6] : memref<8xf32, #tpu.memory_space<smem>>
    %c7 = arith.constant 7 : index
    %8 = memref.load %arg2[%c7] : memref<8xf32, #tpu.memory_space<smem>>
    %c0_2 = arith.constant 0 : index
    %9 = memref.load %arg3[%c0_2] : memref<8xf32, #tpu.memory_space<smem>>
    %c1_3 = arith.constant 1 : index
    %10 = memref.load %arg3[%c1_3] : memref<8xf32, #tpu.memory_space<smem>>
    %c2_4 = arith.constant 2 : index
    %11 = memref.load %arg3[%c2_4] : memref<8xf32, #tpu.memory_space<smem>>
    %c3_5 = arith.constant 3 : index
    %12 = memref.load %arg3[%c3_5] : memref<8xf32, #tpu.memory_space<smem>>
    %c4_6 = arith.constant 4 : index
    %13 = memref.load %arg3[%c4_6] : memref<8xf32, #tpu.memory_space<smem>>
    %c5_7 = arith.constant 5 : index
    %14 = memref.load %arg3[%c5_7] : memref<8xf32, #tpu.memory_space<smem>>
    %c6_8 = arith.constant 6 : index
    %15 = memref.load %arg3[%c6_8] : memref<8xf32, #tpu.memory_space<smem>>
    %c7_9 = arith.constant 7 : index
    %16 = memref.load %arg3[%c7_9] : memref<8xf32, #tpu.memory_space<smem>>
    %c0_10 = arith.constant 0 : index
    %17 = memref.load %arg4[%c0_10] : memref<8xf32, #tpu.memory_space<smem>>
    %c1_11 = arith.constant 1 : index
    %18 = memref.load %arg4[%c1_11] : memref<8xf32, #tpu.memory_space<smem>>
    %c2_12 = arith.constant 2 : index
    %19 = memref.load %arg4[%c2_12] : memref<8xf32, #tpu.memory_space<smem>>
    %c3_13 = arith.constant 3 : index
    %20 = memref.load %arg4[%c3_13] : memref<8xf32, #tpu.memory_space<smem>>
    %c4_14 = arith.constant 4 : index
    %21 = memref.load %arg4[%c4_14] : memref<8xf32, #tpu.memory_space<smem>>
    %c5_15 = arith.constant 5 : index
    %22 = memref.load %arg4[%c5_15] : memref<8xf32, #tpu.memory_space<smem>>
    %c6_16 = arith.constant 6 : index
    %23 = memref.load %arg4[%c6_16] : memref<8xf32, #tpu.memory_space<smem>>
    %c7_17 = arith.constant 7 : index
    %24 = memref.load %arg4[%c7_17] : memref<8xf32, #tpu.memory_space<smem>>
    %c0_18 = arith.constant 0 : index
    %25 = memref.load %arg5[%c0_18] : memref<1xf32, #tpu.memory_space<smem>>
    %26 = vector.broadcast %25 : f32 to vector<8x128xf32>
    %27 = vector.broadcast %1 : f32 to vector<8x128xf32>
    %28 = arith.mulf %0, %27 : vector<8x128xf32>
    %29 = vector.broadcast %9 : f32 to vector<8x128xf32>
    %30 = arith.addf %28, %29 : vector<8x128xf32>
    %31 = math.tanh %30 : vector<8x128xf32>
    %32 = vector.broadcast %17 : f32 to vector<8x128xf32>
    %33 = arith.mulf %32, %31 : vector<8x128xf32>
    %34 = arith.addf %26, %33 : vector<8x128xf32>
    %35 = vector.broadcast %2 : f32 to vector<8x128xf32>
    %36 = arith.mulf %0, %35 : vector<8x128xf32>
    %37 = vector.broadcast %10 : f32 to vector<8x128xf32>
    %38 = arith.addf %36, %37 : vector<8x128xf32>
    %39 = math.tanh %38 : vector<8x128xf32>
    %40 = vector.broadcast %18 : f32 to vector<8x128xf32>
    %41 = arith.mulf %40, %39 : vector<8x128xf32>
    %42 = arith.addf %34, %41 : vector<8x128xf32>
    %43 = vector.broadcast %3 : f32 to vector<8x128xf32>
    %44 = arith.mulf %0, %43 : vector<8x128xf32>
    %45 = vector.broadcast %11 : f32 to vector<8x128xf32>
    %46 = arith.addf %44, %45 : vector<8x128xf32>
    %47 = math.tanh %46 : vector<8x128xf32>
    %48 = vector.broadcast %19 : f32 to vector<8x128xf32>
    %49 = arith.mulf %48, %47 : vector<8x128xf32>
    %50 = arith.addf %42, %49 : vector<8x128xf32>
    %51 = vector.broadcast %4 : f32 to vector<8x128xf32>
    %52 = arith.mulf %0, %51 : vector<8x128xf32>
    %53 = vector.broadcast %12 : f32 to vector<8x128xf32>
    %54 = arith.addf %52, %53 : vector<8x128xf32>
    %55 = math.tanh %54 : vector<8x128xf32>
    %56 = vector.broadcast %20 : f32 to vector<8x128xf32>
    %57 = arith.mulf %56, %55 : vector<8x128xf32>
    %58 = arith.addf %50, %57 : vector<8x128xf32>
    %59 = vector.broadcast %5 : f32 to vector<8x128xf32>
    %60 = arith.mulf %0, %59 : vector<8x128xf32>
    %61 = vector.broadcast %13 : f32 to vector<8x128xf32>
    %62 = arith.addf %60, %61 : vector<8x128xf32>
    %63 = math.tanh %62 : vector<8x128xf32>
    %64 = vector.broadcast %21 : f32 to vector<8x128xf32>
    %65 = arith.mulf %64, %63 : vector<8x128xf32>
    %66 = arith.addf %58, %65 : vector<8x128xf32>
    %67 = vector.broadcast %6 : f32 to vector<8x128xf32>
    %68 = arith.mulf %0, %67 : vector<8x128xf32>
    %69 = vector.broadcast %14 : f32 to vector<8x128xf32>
    %70 = arith.addf %68, %69 : vector<8x128xf32>
    %71 = math.tanh %70 : vector<8x128xf32>
    %72 = vector.broadcast %22 : f32 to vector<8x128xf32>
    %73 = arith.mulf %72, %71 : vector<8x128xf32>
    %74 = arith.addf %66, %73 : vector<8x128xf32>
    %75 = vector.broadcast %7 : f32 to vector<8x128xf32>
    %76 = arith.mulf %0, %75 : vector<8x128xf32>
    %77 = vector.broadcast %15 : f32 to vector<8x128xf32>
    %78 = arith.addf %76, %77 : vector<8x128xf32>
    %79 = math.tanh %78 : vector<8x128xf32>
    %80 = vector.broadcast %23 : f32 to vector<8x128xf32>
    %81 = arith.mulf %80, %79 : vector<8x128xf32>
    %82 = arith.addf %74, %81 : vector<8x128xf32>
    %83 = vector.broadcast %8 : f32 to vector<8x128xf32>
    %84 = arith.mulf %0, %83 : vector<8x128xf32>
    %85 = vector.broadcast %16 : f32 to vector<8x128xf32>
    %86 = arith.addf %84, %85 : vector<8x128xf32>
    %87 = math.tanh %86 : vector<8x128xf32>
    %88 = vector.broadcast %24 : f32 to vector<8x128xf32>
    %89 = arith.mulf %88, %87 : vector<8x128xf32>
    %90 = arith.addf %82, %89 : vector<8x128xf32>
    %c0_19 = arith.constant 0 : index
    %c0_20 = arith.constant 0 : index
    %91 = vector.load %arg6[%c0_19, %c0_20] : memref<8x128xf32, #tpu.memory_space<vmem>>, vector<8x128xf32>
    tpu.vector_store %arg6[%c0_19, %c0_20], %90 {strides = array<i32>} : memref<8x128xf32, #tpu.memory_space<vmem>>, vector<8x128xf32>,
    return
  }
  func.func @transform_0(%arg0: i32) -> (i32, i32) {
    %c0_i32 = arith.constant 0 : i32
    %c0_i32_0 = arith.constant 0 : i32
    return %arg0, %c0_i32 : i32, i32
  }
  func.func @transform_1(%arg0: i32) -> i32 {
    %c0_i32 = arith.constant 0 : i32
    %c0_i32_0 = arith.constant 0 : i32
    return %c0_i32 : i32
  }
  func.func @transform_2(%arg0: i32) -> i32 {
    %c0_i32 = arith.constant 0 : i32
    %c0_i32_0 = arith.constant 0 : i32
    return %c0_i32 : i32
  }
  func.func @transform_3(%arg0: i32) -> i32 {
    %c0_i32 = arith.constant 0 : i32
    %c0_i32_0 = arith.constant 0 : i32
    return %c0_i32 : i32
  }
  func.func @transform_4(%arg0: i32) -> i32 {
    %c0_i32 = arith.constant 0 : i32
    %c0_i32_0 = arith.constant 0 : i32
    return %c0_i32 : i32
  }
  func.func @transform_5(%arg0: i32) -> (i32, i32) {
    %c0_i32 = arith.constant 0 : i32
    %c0_i32_0 = arith.constant 0 : i32
    return %arg0, %c0_i32 : i32, i32
  }
}

</mosaic_0001>

<llo_original>
// kernel: tpu_custom_call.1
$region0: #{tpu_custom_call.1}
  #allocation0 [shape = 'u32[]', space=smem, size = 0x4, offset = 0x4, fixed_abs, tag = 'smem constant byte address 0x4 - core index']
  #allocation1 [shape = 'u32[144,128]{1,0:T(1,128)}', space=vmem, size = 0x12000, scoped, tag = 'internal scratch']
  #allocation2 [shape = 'f32[1]{0:T(128)S(6)}', space=smem, size = 0x200, scoped, tag = 'scoped memory for tpu_custom_call.1']
  %s0 = inlined_call_operand.hbm [shape: f32[16,128], index: 0, kind: input, shape index: {}]
  %s1 = inlined_call_operand.vmem [shape: f32[8], index: 1, kind: input, shape index: {}]
  %s2 = inlined_call_operand.vmem [shape: f32[8], index: 2, kind: input, shape index: {}]
  %s3 = inlined_call_operand.vmem [shape: f32[8], index: 3, kind: input, shape index: {}]
  %s4 = inlined_call_operand.<no memory space> [shape: f32[1], index: 4, kind: input, shape index: {}]
  %s5 = inlined_call_operand.hbm [shape: f32[16,128], index: 5, kind: output, shape index: {}]
  %s6 = sld [smem:[#allocation0]]
  $region69: #{tpu_custom_call.1} parent=0
    _
  %s8 = ssub.s32 1, %s6
  %s9 = scalar_select 0, %s8, %s6
  %10 = sst [smem:[#allocation2]] %s4
  $region1: #{tpu_custom_call.1} parent=0
    #allocation3 [shape = 'u8[8192]{0}', space=vmem, size = 0x2000, scoped, tag = 'input window, operand 0']
    #allocation4 [shape = 's32[2]{0}', space=sflag, size = 0x8, scoped, tag = 'scoped memory for tpu_custom_call.1']
    #allocation5 [shape = 's32[2]{0}', space=sflag, size = 0x8, scoped, tag = 'scoped memory for tpu_custom_call.1']
    #allocation6 [shape = 's32[2]{0}', space=sflag, size = 0x8, scoped, tag = 'scoped memory for tpu_custom_call.1']
    #allocation7 [shape = 'u8[512]{0}', space=smem, size = 0x200, scoped, tag = 'input window, operand 1, single buffered']
    #allocation8 [shape = 'u8[512]{0}', space=smem, size = 0x200, scoped, tag = 'input window, operand 2, single buffered']
    #allocation9 [shape = 's32[1]{0}', space=sflag, size = 0x4, scoped, tag = 'scoped memory for tpu_custom_call.1']
    #allocation10 [shape = 'u8[512]{0}', space=smem, size = 0x200, scoped, tag = 'input window, operand 3, single buffered']
    #allocation11 [shape = 'u8[8192]{0}', space=vmem, size = 0x2000, scoped, tag = 'output window, operand 0']
    %11 = vsyncpa [#allocation4], 0
    %s12 = scalar_lea.sflag [#allocation4], 1
    %13 = vsyncpa %s12, 0
    %14 = vsyncpa [#allocation6], 0
    %15 = vsyncpa [#allocation9], 0
    %16 = vsyncpa [#allocation5], 0
    %s17 = scalar_lea.sflag [#allocation5], 1
    %18 = vsyncpa %s17, 0
    loop: start=0, step=1, limit=4
    $region2: #{tpu_custom_call.1} parent=1 // loop_pre_header
      _
    $region3: #{tpu_custom_call.1} parent=1 // loop_header
      %s20 = sphi 0, %s24
      %p21 = scmp.ge.s32.totalorder %s20, 4
      %s30 = sphi 0, %s32
      %s33 = sphi 0, %s30
      %s34 = sphi 0, %s33
      %s50 = sphi 0, %s34
      %s54 = sphi 0, %s54
      %s56 = sphi 0, %s54
      %s57 = sphi 0, %s56
      %s71 = sphi 0, %s57
      %s75 = sphi 0, %s75
      %s77 = sphi 0, %s75
      %s78 = sphi 0, %s77
      %s92 = sphi 0, %s78
      %s96 = sphi 0, %s96
      %s98 = sphi 0, %s96
      %s99 = sphi 0, %s98
      %s113 = sphi 0, %s99
      %s117 = sphi 0, %s117
      %s119 = sphi 0, %s117
      %s120 = sphi 0, %s119
      %s134 = sphi 0, %s120
      %s140 = sphi 0, %s142
      %s143 = sphi 0, %s140
      %s144 = sphi 0, %s143
      %s160 = sphi 0, %s144
    $region4: #{tpu_custom_call.1} parent=1 // loop_header_branch
      %23 = sbr.rel (%p21) target = $region8
    $region5: #{tpu_custom_call.1} parent=1 // loop_body
      %s25 = ssub.s32 %s20, 1
      %s26 = ssub.s32 %s20, 2
      %s27 = sadd.s32 %s20, 1
      %s28 = ssub.s32 %s20, %s27
      %p29 = scmp.eq.s32.totalorder %s28, 0
      %s31 = sadd.s32 %s30, 1
      %s32 = scalar_select %p29, %s30, %s31
      %p35 = pneg %p29
      %p36 = scmp.eq.s32.totalorder %s20, 1
      %p37 = por %p35, %p36
      %p38 = scmp.ne.s32.totalorder %s30, %s33
      %p39 = scmp.eq.s32.totalorder %s20, 0
      %p40 = por %p38, %p39
      %p41 = scmp.ne.s32.totalorder %s30, %s33
      %p42 = scmp.eq.s32.totalorder %s25, 1
      %p43 = por %p41, %p42
      %p44 = scmp.ne.s32.totalorder %s33, %s34
      %p45 = scmp.eq.s32.totalorder %s25, 0
      %p46 = por %p44, %p45
      %p47 = scmp.ne.s32.totalorder %s33, %s34
      %p48 = scmp.eq.s32.totalorder %s26, 1
      %p49 = por %p47, %p48
      %p51 = scmp.ne.s32.totalorder %s34, %s50
      %p52 = scmp.eq.s32.totalorder %s26, 0
      %p53 = por %p51, %p52
      %s55 = sadd.s32 %s54, 1
      %p58 = scmp.eq.s32.totalorder %s20, 1
      %p59 = scmp.ne.s32.totalorder %s54, %s56
      %p60 = scmp.eq.s32.totalorder %s20, 0
      %p61 = por %p59, %p60
      %p62 = scmp.ne.s32.totalorder %s54, %s56
      %p63 = scmp.eq.s32.totalorder %s25, 1
      %p64 = por %p62, %p63
      %p65 = scmp.ne.s32.totalorder %s56, %s57
      %p66 = scmp.eq.s32.totalorder %s25, 0
      %p67 = por %p65, %p66
      %p68 = scmp.ne.s32.totalorder %s56, %s57
      %p69 = scmp.eq.s32.totalorder %s26, 1
      %p70 = por %p68, %p69
      %p72 = scmp.ne.s32.totalorder %s57, %s71
      %p73 = scmp.eq.s32.totalorder %s26, 0
      %p74 = por %p72, %p73
      %s76 = sadd.s32 %s75, 1
      %p79 = scmp.eq.s32.totalorder %s20, 1
      %p80 = scmp.ne.s32.totalorder %s75, %s77
      %p81 = scmp.eq.s32.totalorder %s20, 0
      %p82 = por %p80, %p81
      %p83 = scmp.ne.s32.totalorder %s75, %s77
      %p84 = scmp.eq.s32.totalorder %s25, 1
      %p85 = por %p83, %p84
      %p86 = scmp.ne.s32.totalorder %s77, %s78
      %p87 = scmp.eq.s32.totalorder %s25, 0
      %p88 = por %p86, %p87
      %p89 = scmp.ne.s32.totalorder %s77, %s78
      %p90 = scmp.eq.s32.totalorder %s26, 1
      %p91 = por %p89, %p90
      %p93 = scmp.ne.s32.totalorder %s78, %s92
      %p94 = scmp.eq.s32.totalorder %s26, 0
      %p95 = por %p93, %p94
      %s97 = sadd.s32 %s96, 1
      %p100 = scmp.eq.s32.totalorder %s20, 1
      %p101 = scmp.ne.s32.totalorder %s96, %s98
      %p102 = scmp.eq.s32.totalorder %s20, 0
      %p103 = por %p101, %p102
      %p104 = scmp.ne.s32.totalorder %s96, %s98
      %p105 = scmp.eq.s32.totalorder %s25, 1
      %p106 = por %p104, %p105
      %p107 = scmp.ne.s32.totalorder %s98, %s99
      %p108 = scmp.eq.s32.totalorder %s25, 0
      %p109 = por %p107, %p108
      %p110 = scmp.ne.s32.totalorder %s98, %s99
      %p111 = scmp.eq.s32.totalorder %s26, 1
      %p112 = por %p110, %p111
      %p114 = scmp.ne.s32.totalorder %s99, %s113
      %p115 = scmp.eq.s32.totalorder %s26, 0
      %p116 = por %p114, %p115
      %s118 = sadd.s32 %s117, 1
      %p121 = scmp.eq.s32.totalorder %s20, 1
      %p122 = scmp.ne.s32.totalorder %s117, %s119
      %p123 = scmp.eq.s32.totalorder %s20, 0
      %p124 = por %p122, %p123
      %p125 = scmp.ne.s32.totalorder %s117, %s119
      %p126 = scmp.eq.s32.totalorder %s25, 1
      %p127 = por %p125, %p126
      %p128 = scmp.ne.s32.totalorder %s119, %s120
      %p129 = scmp.eq.s32.totalorder %s25, 0
      %p130 = por %p128, %p129
      %p131 = scmp.ne.s32.totalorder %s119, %s120
      %p132 = scmp.eq.s32.totalorder %s26, 1
      %p133 = por %p131, %p132
      %p135 = scmp.ne.s32.totalorder %s120, %s134
      %p136 = scmp.eq.s32.totalorder %s26, 0
      %p137 = por %p135, %p136
      %s138 = ssub.s32 %s20, %s27
      %p139 = scmp.eq.s32.totalorder %s138, 0
      %s141 = sadd.s32 %s140, 1
      %s142 = scalar_select %p139, %s140, %s141
      %p145 = pneg %p139
      %p146 = scmp.eq.s32.totalorder %s20, 1
      %p147 = por %p145, %p146
      %p148 = scmp.ne.s32.totalorder %s140, %s143
      %p149 = scmp.eq.s32.totalorder %s20, 0
      %p150 = por %p148, %p149
      %p151 = scmp.ne.s32.totalorder %s140, %s143
      %p152 = scmp.eq.s32.totalorder %s25, 1
      %p153 = por %p151, %p152
      %p154 = scmp.ne.s32.totalorder %s143, %s144
      %p155 = scmp.eq.s32.totalorder %s25, 0
      %p156 = por %p154, %p155
      %p157 = scmp.ne.s32.totalorder %s143, %s144
      %p158 = scmp.eq.s32.totalorder %s26, 1
      %p159 = por %p157, %p158
      %p161 = scmp.ne.s32.totalorder %s144, %s160
      %p162 = scmp.eq.s32.totalorder %s26, 0
      %p163 = por %p161, %p162
      %p164 = scmp.le.s32.totalorder 1, %s20
      %p165 = scmp.lt.s32.totalorder %s20, 3
      %p166 = pnand %p164, %p165
      %p167 = pneg %p166
      // Predicated region
      $region9: #{tpu_custom_call.1} parent=5 // pred_check
        _
      $region10: #{tpu_custom_call.1} parent=5 // pred_check_branch
        %169 = sbr.rel (%p166) target = $region12
      $region11: #{tpu_custom_call.1} parent=5 // pred_region
        %s170 = ssub.s32 %s20, 1
        // Predicated region
        $region13: #{tpu_custom_call.1} parent=11 // pred_check
          %p171 = pneg %p67
        $region14: #{tpu_custom_call.1} parent=11 // pred_check_branch
          %173 = sbr.rel (%p171) target = $region16
        $region15: #{tpu_custom_call.1} parent=11 // pred_region
          %s175 = ssub.s32 16, 16
          %176 = vsyncadd [#allocation6], %s175
          %s178 = sshll.u32 %s1, 4
          %s179 = int_to_ptr.vmem [resolvable:$true] %s178
          %181 = dma.vmem_to_smem %s179, 16, [#allocation7], [#allocation6]
        $region16: #{tpu_custom_call.1} parent=11 // pred_fallthru
          _
        // Predicated region
        $region17: #{tpu_custom_call.1} parent=11 // pred_check
          %p182 = pneg %p88
        $region18: #{tpu_custom_call.1} parent=11 // pred_check_branch
          %184 = sbr.rel (%p182) target = $region20
        $region19: #{tpu_custom_call.1} parent=11 // pred_region
          %s186 = ssub.s32 16, 16
          %187 = vsyncadd [#allocation9], %s186
          %s189 = sshll.u32 %s2, 4
          %s190 = int_to_ptr.vmem [resolvable:$true] %s189
          %192 = dma.vmem_to_smem %s190, 16, [#allocation8], [#allocation9]
        $region20: #{tpu_custom_call.1} parent=11 // pred_fallthru
          _
        // Predicated region
        $region21: #{tpu_custom_call.1} parent=11 // pred_check
          %p193 = pneg %p109
        $region22: #{tpu_custom_call.1} parent=11 // pred_check_branch
          %195 = sbr.rel (%p193) target = $region24
        $region23: #{tpu_custom_call.1} parent=11 // pred_region
          %s197 = ssub.s32 16, 16
          %198 = vsyncadd [#allocation9], %s197
          %s200 = sshll.u32 %s3, 4
          %s201 = int_to_ptr.vmem [resolvable:$true] %s200
          %203 = dma.vmem_to_smem %s201, 16, [#allocation10], [#allocation9]
        $region24: #{tpu_custom_call.1} parent=11 // pred_fallthru
          _
        // Predicated region
        $region25: #{tpu_custom_call.1} parent=11 // pred_check
          %p204 = pneg %p130
        $region26: #{tpu_custom_call.1} parent=11 // pred_check_branch
          %206 = sbr.rel (%p204) target = $region28
        $region27: #{tpu_custom_call.1} parent=11 // pred_region
          _
        $region28: #{tpu_custom_call.1} parent=11 // pred_fallthru
          _
      $region12: #{tpu_custom_call.1} parent=5 // pred_fallthru
        _
      %p207 = scmp.lt.s32.totalorder %s20, 2
      // Predicated region
      $region29: #{tpu_custom_call.1} parent=5 // pred_check
        %p208 = pneg %p207
      $region30: #{tpu_custom_call.1} parent=5 // pred_check_branch
        %210 = sbr.rel (%p208) target = $region32
      $region31: #{tpu_custom_call.1} parent=5 // pred_region
        // Predicated region
        $region33: #{tpu_custom_call.1} parent=31 // pred_check
          %p211 = pneg %p40
        $region34: #{tpu_custom_call.1} parent=31 // pred_check_branch
          %213 = sbr.rel (%p211) target = $region36
        $region35: #{tpu_custom_call.1} parent=31 // pred_region
          %s214 = sand.u32 %s30, 1
          %s215 = scalar_lea.sflag [#allocation4], %s214
          %s216 = sand.u32 %s30, 1
          %s217 = smul.addr %s216, 8
          %s218 = scalar_lea.vmem [#allocation3], %s217
          %s220 = ssub.s32 128, 128
          %221 = vsyncadd %s215, %s220
          %s222 = smul.addr %s20, 128
          %s223 = scalar_lea.hbm %s0, %s222
          %s225 = sshll.u32 %s218, 4
          %s226 = int_to_ptr.vmem [resolvable:$true] %s225
          %228 = dma.hbm_to_vmem [thread:$0]  %s223, 128, %s226, %s215
        $region36: #{tpu_custom_call.1} parent=31 // pred_fallthru
          _
      $region32: #{tpu_custom_call.1} parent=5 // pred_fallthru
        _
      %p229 = scmp.le.s32.totalorder 1, %s20
      %p230 = scmp.lt.s32.totalorder %s20, 3
      %p231 = pnand %p229, %p230
      %p232 = pneg %p231
      // Predicated region
      $region37: #{tpu_custom_call.1} parent=5 // pred_check
        _
      $region38: #{tpu_custom_call.1} parent=5 // pred_check_branch
        %234 = sbr.rel (%p231) target = $region40
      $region39: #{tpu_custom_call.1} parent=5 // pred_region
        %s235 = ssub.s32 %s20, 1
        %s236 = sand.u32 %s33, 1
        %s237 = scalar_lea.sflag [#allocation4], %s236
        %s238 = sand.u32 %s33, 1
        %s239 = smul.addr %s238, 8
        %s240 = scalar_lea.vmem [#allocation3], %s239
        // Predicated region
        $region41: #{tpu_custom_call.1} parent=39 // pred_check
          %p241 = pneg %p46
        $region42: #{tpu_custom_call.1} parent=39 // pred_check_branch
          %243 = sbr.rel (%p241) target = $region44
        $region43: #{tpu_custom_call.1} parent=39 // pred_region
          %244 = dma.done %s237, 128
        $region44: #{tpu_custom_call.1} parent=39 // pred_fallthru
          _
        // Predicated region
        $region45: #{tpu_custom_call.1} parent=39 // pred_check
          %p245 = pneg %p67
        $region46: #{tpu_custom_call.1} parent=39 // pred_check_branch
          %247 = sbr.rel (%p245) target = $region48
        $region47: #{tpu_custom_call.1} parent=39 // pred_region
          %248 = dma.done [#allocation6], 16
        $region48: #{tpu_custom_call.1} parent=39 // pred_fallthru
          _
        // Predicated region
        $region49: #{tpu_custom_call.1} parent=39 // pred_check
          %p249 = pneg %p88
        $region50: #{tpu_custom_call.1} parent=39 // pred_check_branch
          %251 = sbr.rel (%p249) target = $region52
        $region51: #{tpu_custom_call.1} parent=39 // pred_region
          %252 = dma.done [#allocation9], 16
        $region52: #{tpu_custom_call.1} parent=39 // pred_fallthru
          _
        // Predicated region
        $region53: #{tpu_custom_call.1} parent=39 // pred_check
          %p253 = pneg %p109
        $region54: #{tpu_custom_call.1} parent=39 // pred_check_branch
          %255 = sbr.rel (%p253) target = $region56
        $region55: #{tpu_custom_call.1} parent=39 // pred_region
          %256 = dma.done [#allocation9], 16
        $region56: #{tpu_custom_call.1} parent=39 // pred_fallthru
          _
        %257 = sfence
        %s258 = sand.u32 %s33, 1
        %s259 = scalar_lea.sflag [#allocation4], %s258
        %s260 = sand.u32 %s33, 1
        %s261 = smul.addr %s260, 8
        %s262 = scalar_lea.vmem [#allocation3], %s261
        %p263 = pneg %p46
        %p264 = pneg %p43
        %p265 = pneg %p67
        %p266 = pneg %p64
        %p267 = pneg %p88
        %p268 = pneg %p85
        %p269 = pneg %p109
        %p270 = pneg %p106
        %p271 = pneg %p130
        %p272 = pneg %p127
        %p273 = pneg %p156
        %p274 = pneg %p153
        %s275 = sand.u32 %s143, 1
        %s276 = scalar_lea.sflag [#allocation5], %s275
        %s277 = sand.u32 %s143, 1
        %s278 = smul.addr %s277, 8
        %s279 = scalar_lea.vmem [#allocation11], %s278
        %v280 = vld [vmem:[%s240] sm:$0xff]
        %s281 = sld [smem:[#allocation7]]
        %s282 = sld [smem:[#allocation7 + $0x1]]
        %s283 = sld [smem:[#allocation7 + $0x2]]
        %s284 = sld [smem:[#allocation7 + $0x3]]
        %s285 = sld [smem:[#allocation7 + $0x4]]
        %s286 = sld [smem:[#allocation7 + $0x5]]
        %s287 = sld [smem:[#allocation7 + $0x6]]
        %s288 = sld [smem:[#allocation7 + $0x7]]
        %s289 = sld [smem:[#allocation8]]
        %s290 = sld [smem:[#allocation8 + $0x1]]
        %s291 = sld [smem:[#allocation8 + $0x2]]
        %s292 = sld [smem:[#allocation8 + $0x3]]
        %s293 = sld [smem:[#allocation8 + $0x4]]
        %s294 = sld [smem:[#allocation8 + $0x5]]
        %s295 = sld [smem:[#allocation8 + $0x6]]
        %s296 = sld [smem:[#allocation8 + $0x7]]
        %s297 = sld [smem:[#allocation10]]
        %s298 = sld [smem:[#allocation10 + $0x1]]
        %s299 = sld [smem:[#allocation10 + $0x2]]
        %s300 = sld [smem:[#allocation10 + $0x3]]
        %s301 = sld [smem:[#allocation10 + $0x4]]
        %s302 = sld [smem:[#allocation10 + $0x5]]
        %s303 = sld [smem:[#allocation10 + $0x6]]
        %s304 = sld [smem:[#allocation10 + $0x7]]
        %s305 = sld [smem:[#allocation2]]
        %v306 = vstv %s305
        %v307 = vstv %s281
        %v308 = vmul.f32 %v280, %v307
        %v309 = vstv %s289
        %v310 = vadd.f32 %v308, %v309
        %v311 = vtanh.pop %v310
        %v312 = vstv %s297
        %v313 = vmul.f32 %v312, %v311
        %v314 = vadd.f32 %v306, %v313
        %v315 = vstv %s282
        %v316 = vmul.f32 %v280, %v315
        %v317 = vstv %s290
        %v318 = vadd.f32 %v316, %v317
        %v319 = vtanh.pop %v318
        %v320 = vstv %s298
        %v321 = vmul.f32 %v320, %v319
        %v322 = vadd.f32 %v314, %v321
        %v323 = vstv %s283
        %v324 = vmul.f32 %v280, %v323
        %v325 = vstv %s291
        %v326 = vadd.f32 %v324, %v325
        %v327 = vtanh.pop %v326
        %v328 = vstv %s299
        %v329 = vmul.f32 %v328, %v327
        %v330 = vadd.f32 %v322, %v329
        %v331 = vstv %s284
        %v332 = vmul.f32 %v280, %v331
        %v333 = vstv %s292
        %v334 = vadd.f32 %v332, %v333
        %v335 = vtanh.pop %v334
        %v336 = vstv %s300
        %v337 = vmul.f32 %v336, %v335
        %v338 = vadd.f32 %v330, %v337
        %v339 = vstv %s285
        %v340 = vmul.f32 %v280, %v339
        %v341 = vstv %s293
        %v342 = vadd.f32 %v340, %v341
        %v343 = vtanh.pop %v342
        %v344 = vstv %s301
        %v345 = vmul.f32 %v344, %v343
        %v346 = vadd.f32 %v338, %v345
        %v347 = vstv %s286
        %v348 = vmul.f32 %v280, %v347
        %v349 = vstv %s294
        %v350 = vadd.f32 %v348, %v349
        %v351 = vtanh.pop %v350
        %v352 = vstv %s302
        %v353 = vmul.f32 %v352, %v351
        %v354 = vadd.f32 %v346, %v353
        %v355 = vstv %s287
        %v356 = vmul.f32 %v280, %v355
        %v357 = vstv %s295
        %v358 = vadd.f32 %v356, %v357
        %v359 = vtanh.pop %v358
        %v360 = vstv %s303
        %v361 = vmul.f32 %v360, %v359
        %v362 = vadd.f32 %v354, %v361
        %v363 = vstv %s288
        %v364 = vmul.f32 %v280, %v363
        %v365 = vstv %s296
        %v366 = vadd.f32 %v364, %v365
        %v367 = vtanh.pop %v366
        %v368 = vstv %s304
        %v369 = vmul.f32 %v368, %v367
        %v370 = vadd.f32 %v362, %v369
        %371 = vst [vmem:[%s279] sm:$0xff] %v370
        %s372 = sand.u32 %s143, 1
        %s373 = scalar_lea.sflag [#allocation5], %s372
        %s374 = sand.u32 %s143, 1
        %s375 = smul.addr %s374, 8
        %s376 = scalar_lea.vmem [#allocation11], %s375
        // Predicated region
        $region57: #{tpu_custom_call.1} parent=39 // pred_check
          %p377 = pneg %p153
        $region58: #{tpu_custom_call.1} parent=39 // pred_check_branch
          %379 = sbr.rel (%p377) target = $region60
        $region59: #{tpu_custom_call.1} parent=39 // pred_region
          %s381 = ssub.s32 128, 128
          %382 = vsyncadd %s373, %s381
          %s383 = smul.addr %s25, 128
          %s384 = scalar_lea.hbm %s5, %s383
          %s386 = sshll.u32 %s376, 4
          %s387 = int_to_ptr.vmem [resolvable:$true] %s386
          %389 = dma.vmem_to_hbm [thread:$0]  %s387, 128, %s384, %s373
        $region60: #{tpu_custom_call.1} parent=39 // pred_fallthru
          _
      $region40: #{tpu_custom_call.1} parent=5 // pred_fallthru
        _
      %p390 = scmp.le.s32.totalorder 2, %s20
      // Predicated region
      $region61: #{tpu_custom_call.1} parent=5 // pred_check
        %p391 = pneg %p390
      $region62: #{tpu_custom_call.1} parent=5 // pred_check_branch
        %393 = sbr.rel (%p391) target = $region64
      $region63: #{tpu_custom_call.1} parent=5 // pred_region
        %s394 = ssub.s32 %s20, 2
        // Predicated region
        $region65: #{tpu_custom_call.1} parent=63 // pred_check
          %p395 = pneg %p159
        $region66: #{tpu_custom_call.1} parent=63 // pred_check_branch
          %397 = sbr.rel (%p395) target = $region68
        $region67: #{tpu_custom_call.1} parent=63 // pred_region
          %s398 = sand.u32 %s144, 1
          %s399 = scalar_lea.sflag [#allocation5], %s398
          %s400 = sand.u32 %s144, 1
          %s401 = smul.addr %s400, 8
          %s402 = scalar_lea.vmem [#allocation11], %s401
          %403 = dma.done %s399, 128
        $region68: #{tpu_custom_call.1} parent=63 // pred_fallthru
          _
      $region64: #{tpu_custom_call.1} parent=5 // pred_fallthru
        _
    $region6: #{tpu_custom_call.1} parent=1 // loop_footer
      %s24 = sadd.s32 1, %s20
    $region7: #{tpu_custom_call.1} parent=1 // loop_footer_branch
      %19 = sbr.rel target = $region3
    $region8: #{tpu_custom_call.1} parent=1 // loop_exit
      _
    %404 = vsyncpa [#allocation4], 1
    %s405 = scalar_lea.sflag [#allocation4], 1
    %406 = vsyncpa %s405, 1
    %407 = vsyncpa [#allocation5], 1
    %s408 = scalar_lea.sflag [#allocation5], 1
    %409 = vsyncpa %s408, 1
    %410 = vsyncpa [#allocation6], 1
    %s411 = scalar_lea.sflag [#allocation6], 1
    %412 = vsyncpa %s411, 1
    %413 = vsyncpa [#allocation9], 1

</llo_original>
